<compile_context>
chip_gen: v7x
topology: tpu7x:2x2x1
jax: 0.10.0
libtpu: 0.0.40
codegen_flags: <defaults>
</compile_context>

<pallas_src>
import jax
import jax.numpy as jnp
from jax.experimental import pallas as pl
from jax.experimental.pallas import tpu as pltpu


def qfunc_kernel(obs_ref, act_ref, w1o_ref, w1a_ref, b1_ref,
                 w2_ref, b2_ref, w3_ref, b3_ref, o_ref):
    """One batch tile of the fused SAC Q-MLP (relu(relu(x@W1+b1)@W2+b2)@W3+b3)."""
    # Layer 1 -- concat fused as a split matmul, f32 accumulation on the MXU.
    h1 = (jnp.dot(obs_ref[...], w1o_ref[...], preferred_element_type=jnp.float32)
          + jnp.dot(act_ref[...], w1a_ref[...], preferred_element_type=jnp.float32)
          + b1_ref[...])
    h1 = jnp.maximum(h1, 0.0)                              # ReLU in f32 (v5e-safe)

    # Layer 2 -- cast activations to the weight compute dtype (no-op for f32).
    h2 = jnp.dot(h1.astype(w2_ref.dtype), w2_ref[...],
                 preferred_element_type=jnp.float32) + b2_ref[...]
    h2 = jnp.maximum(h2, 0.0)

    # Layer 3 (out_features = 1): broadcast-mul (VPU) + lane reduce (XLU)
    # instead of an MXU pass that would use a single output lane.
    q = jnp.sum(h2 * w3_ref[...], axis=-1, keepdims=True) + b3_ref[...]
    o_ref[...] = q.astype(o_ref.dtype)


def mlp_q_forward(obs, act, params, *, block_b=512, use_bf16=False):
    """obs: (B, obs_dim), act: (B, act_dim)  ->  q: (B,)"""
    assert block_b % 8 == 0, "batch tile must be sublane (8) aligned"
    w1, b1, w2, b2, w3, b3 = params
    B, obs_dim = obs.shape
    act_dim = act.shape[-1]
    h1_dim = w1.shape[1]
    h2_dim = w2.shape[1]

    compute_dtype = jnp.bfloat16 if use_bf16 else jnp.float32

    # Split W1 row-wise so the obs/act concat never materializes in HBM.
    w1o = w1[:obs_dim].astype(compute_dtype)
    w1a = w1[obs_dim:].astype(compute_dtype)
    w2c = w2.astype(compute_dtype)
    b1f = b1.astype(jnp.float32)
    b2f = b2.astype(jnp.float32)
    w3row = jnp.reshape(w3, (1, h2_dim)).astype(jnp.float32)
    b3f = jnp.reshape(b3, (1, 1)).astype(jnp.float32)

    obs_c = obs.astype(compute_dtype)
    act_c = act.astype(compute_dtype)

    # Batch tiling: TB must be a multiple of 8 OR cover the whole batch.
    if B <= block_b:
        tb = B
        b_pad = B
    else:
        tb = block_b
        b_pad = pl.cdiv(B, tb) * tb
        if b_pad != B:  # pad the ragged tail (results for pad rows are dropped)
            pad = b_pad - B
            obs_c = jnp.pad(obs_c, ((0, pad), (0, 0)))
            act_c = jnp.pad(act_c, ((0, pad), (0, 0)))
    n_blocks = b_pad // tb

    in_bytes = obs_c.dtype.itemsize
    flops = 2 * B * ((obs_dim + act_dim) * h1_dim + h1_dim * h2_dim + h2_dim)
    bytes_accessed = int(
        B * (obs_dim + act_dim) * in_bytes                      # obs + act stream
        + B * 4                                                  # q output
        + (obs_dim + act_dim) * h1_dim * in_bytes                # W1
        + h1_dim * h2_dim * in_bytes                             # W2
        + (h1_dim + h2_dim + h2_dim + 1) * 4)                    # b1, b2, W3, b3

    q_pad = pl.pallas_call(
        qfunc_kernel,
        out_shape=jax.ShapeDtypeStruct((b_pad, 1), jnp.float32),
        grid=(n_blocks,),
        in_specs=[
            pl.BlockSpec((tb, obs_dim), lambda i: (i, 0)),       # obs tile
            pl.BlockSpec((tb, act_dim), lambda i: (i, 0)),       # act tile
            pl.BlockSpec((obs_dim, h1_dim), lambda i: (0, 0)),   # W1[:obs_dim]
            pl.BlockSpec((act_dim, h1_dim), lambda i: (0, 0)),   # W1[obs_dim:]
            pl.BlockSpec((1, h1_dim), lambda i: (0, 0)),         # b1
            pl.BlockSpec((h1_dim, h2_dim), lambda i: (0, 0)),    # W2
            pl.BlockSpec((1, h2_dim), lambda i: (0, 0)),         # b2
            pl.BlockSpec((1, h2_dim), lambda i: (0, 0)),         # W3 (as a row)
            pl.BlockSpec((1, 1), lambda i: (0, 0)),              # b3
        ],
        out_specs=pl.BlockSpec((tb, 1), lambda i: (i, 0)),
        compiler_params=pltpu.CompilerParams(
            dimension_semantics=("parallel",)),                  # megacore on v7x
        cost_estimate=pl.CostEstimate(
            flops=flops, transcendentals=0, bytes_accessed=bytes_accessed),
    )(obs_c, act_c, w1o, w1a, b1f, w2c, b2f, w3row, b3f)

    return q_pad[:B, 0]                                          # torch.squeeze(q, -1)


def init_params(key, obs_dim, act_dim, hidden_sizes):
    """Synthetic init mirroring nn.Linear: W as (in, out), b as (1, out)."""
    sizes = [obs_dim + act_dim] + list(hidden_sizes) + [1]
    params = []
    for j in range(len(sizes) - 1):
        key, kw, kb = jax.random.split(key, 3)
        bound = 1.0 / jnp.sqrt(sizes[j])
        w = jax.random.uniform(kw, (sizes[j], sizes[j + 1]), jnp.float32, -bound, bound)
        b = jax.random.uniform(kb, (1, sizes[j + 1]), jnp.float32, -bound, bound)
        params += [w, b]
    return tuple(params)


def reference_forward(obs, act, params):
    """Pure-JAX reference of the same MLP, for correctness checks."""
    w1, b1, w2, b2, w3, b3 = params
    x = jnp.concatenate([obs, act], axis=-1).astype(jnp.float32)
    h = jnp.maximum(x @ w1 + b1, 0.0)
    h = jnp.maximum(h @ w2 + b2, 0.0)
    q = h @ w3 + b3
    return jnp.squeeze(q, -1)


if __name__ == "__main__":
    # Small shapes consistent with a SAC Q-function.
    B, obs_dim, act_dim = 8, 16, 8
    hidden_sizes = (32, 32)

    key = jax.random.PRNGKey(0)
    k_obs, k_act, k_params = jax.random.split(key, 3)

    obs = jax.random.normal(k_obs, (B, obs_dim), jnp.float32)
    act = jax.random.normal(k_act, (B, act_dim), jnp.float32)
    params = init_params(k_params, obs_dim, act_dim, hidden_sizes)

    q_ref = reference_forward(obs, act, params)

    # 1) f32 path (faithful to the PyTorch module), single tile.
    q = mlp_q_forward(obs, act, params)
    jax.block_until_ready(q)
    assert q.shape == (B,), q.shape
    assert jnp.allclose(q, q_ref, atol=1e-5, rtol=1e-5), "f32 mismatch vs reference"

    # 2) Multi-tile + ragged-batch path (grid > 1, batch padding).
    B2 = 20
    k_o2, k_a2 = jax.random.split(jax.random.PRNGKey(1))
    obs2 = jax.random.normal(k_o2, (B2, obs_dim), jnp.float32)
    act2 = jax.random.normal(k_a2, (B2, act_dim), jnp.float32)
    q2 = mlp_q_forward(obs2, act2, params, block_b=8)
    jax.block_until_ready(q2)
    q2_ref = reference_forward(obs2, act2, params)
    assert q2.shape == (B2,), q2.shape
    assert jnp.allclose(q2, q2_ref, atol=1e-5, rtol=1e-5), "tiled mismatch vs reference"

    # 3) bf16 matmul-operand path (v6e/v7x MXU-friendly), f32 accumulation.
    q_bf16 = mlp_q_forward(obs, act, params, use_bf16=True)
    jax.block_until_ready(q_bf16)
    assert jnp.allclose(q_bf16, q_ref, atol=5e-2, rtol=5e-2), "bf16 mismatch vs reference"

    print("KERNEL_OK")
</pallas_src>

<mosaic_0001>
module attributes {stable_mosaic.version = 11 : i64} {
  func.func @qfunc_kernel(%arg0: i32, %arg1: memref<8x16xf32, #tpu.memory_space<vmem>>, %arg2: memref<8x8xf32, #tpu.memory_space<vmem>>, %arg3: memref<16x32xf32, #tpu.memory_space<vmem>>, %arg4: memref<8x32xf32, #tpu.memory_space<vmem>>, %arg5: memref<1x32xf32, #tpu.memory_space<vmem>>, %arg6: memref<32x32xf32, #tpu.memory_space<vmem>>, %arg7: memref<1x32xf32, #tpu.memory_space<vmem>>, %arg8: memref<1x32xf32, #tpu.memory_space<vmem>>, %arg9: memref<1x1xf32, #tpu.memory_space<vmem>>, %arg10: memref<8x1xf32, #tpu.memory_space<vmem>>) attributes {dimension_semantics = [#tpu.dimension_semantics<parallel>], iteration_bounds = array<i64: 1>, scalar_prefetch = 0 : i64, scratch_operands = 0 : i64, tpu.core_type = #tpu.core_type<tc>, window_params = [{transform_indices = @transform_0, window_bounds = array<i64: 8, 16>}, {transform_indices = @transform_1, window_bounds = array<i64: 8, 8>}, {pipeline_mode = #tpu.pipeline_mode<synchronous>, transform_indices = @transform_2, window_bounds = array<i64: 16, 32>}, {pipeline_mode = #tpu.pipeline_mode<synchronous>, transform_indices = @transform_3, window_bounds = array<i64: 8, 32>}, {pipeline_mode = #tpu.pipeline_mode<synchronous>, transform_indices = @transform_4, window_bounds = array<i64: 1, 32>}, {pipeline_mode = #tpu.pipeline_mode<synchronous>, transform_indices = @transform_5, window_bounds = array<i64: 32, 32>}, {pipeline_mode = #tpu.pipeline_mode<synchronous>, transform_indices = @transform_6, window_bounds = array<i64: 1, 32>}, {pipeline_mode = #tpu.pipeline_mode<synchronous>, transform_indices = @transform_7, window_bounds = array<i64: 1, 32>}, {pipeline_mode = #tpu.pipeline_mode<synchronous>, transform_indices = @transform_8, window_bounds = array<i64: 1, 1>}, {transform_indices = @transform_9, window_bounds = array<i64: 8, 1>}]} {
    %c0 = arith.constant 0 : index
    %c0_0 = arith.constant 0 : index
    %0 = vector.load %arg1[%c0, %c0_0] : memref<8x16xf32, #tpu.memory_space<vmem>>, vector<8x16xf32>
    %c0_1 = arith.constant 0 : index
    %c0_2 = arith.constant 0 : index
    %1 = vector.load %arg3[%c0_1, %c0_2] : memref<16x32xf32, #tpu.memory_space<vmem>>, vector<16x32xf32>
    %cst = arith.constant dense<0.000000e+00> : vector<8x32xf32>
    %2 = tpu.matmul %0, %1, %cst {dimension_numbers = #tpu.dot_dimension_numbers<[1], [0], [0], [1], [0, 0, 1, 1], [], []>} : vector<8x16xf32>, vector<16x32xf32>, vector<8x32xf32> -> vector<8x32xf32>
    %c0_3 = arith.constant 0 : index
    %c0_4 = arith.constant 0 : index
    %3 = vector.load %arg2[%c0_3, %c0_4] : memref<8x8xf32, #tpu.memory_space<vmem>>, vector<8x8xf32>
    %c0_5 = arith.constant 0 : index
    %c0_6 = arith.constant 0 : index
    %4 = vector.load %arg4[%c0_5, %c0_6] : memref<8x32xf32, #tpu.memory_space<vmem>>, vector<8x32xf32>
    %cst_7 = arith.constant dense<0.000000e+00> : vector<8x32xf32>
    %5 = tpu.matmul %3, %4, %cst_7 {dimension_numbers = #tpu.dot_dimension_numbers<[1], [0], [0], [1], [0, 0, 1, 1], [], []>} : vector<8x8xf32>, vector<8x32xf32>, vector<8x32xf32> -> vector<8x32xf32>
    %6 = arith.addf %2, %5 : vector<8x32xf32>
    %c0_8 = arith.constant 0 : index
    %c0_9 = arith.constant 0 : index
    %7 = vector.load %arg5[%c0_8, %c0_9] : memref<1x32xf32, #tpu.memory_space<vmem>>, vector<1x32xf32>
    %8 = vector.broadcast %7 : vector<1x32xf32> to vector<8x32xf32>
    %9 = arith.addf %6, %8 : vector<8x32xf32>
    %cst_10 = arith.constant 0.000000e+00 : f32
    %10 = vector.broadcast %cst_10 : f32 to vector<8x32xf32>
    %11 = arith.maximumf %9, %10 : vector<8x32xf32>
    %c0_11 = arith.constant 0 : index
    %c0_12 = arith.constant 0 : index
    %12 = vector.load %arg6[%c0_11, %c0_12] : memref<32x32xf32, #tpu.memory_space<vmem>>, vector<32x32xf32>
    %cst_13 = arith.constant dense<0.000000e+00> : vector<8x32xf32>
    %13 = tpu.matmul %11, %12, %cst_13 {dimension_numbers = #tpu.dot_dimension_numbers<[1], [0], [0], [1], [0, 0, 1, 1], [], []>} : vector<8x32xf32>, vector<32x32xf32>, vector<8x32xf32> -> vector<8x32xf32>
    %c0_14 = arith.constant 0 : index
    %c0_15 = arith.constant 0 : index
    %14 = vector.load %arg7[%c0_14, %c0_15] : memref<1x32xf32, #tpu.memory_space<vmem>>, vector<1x32xf32>
    %15 = vector.broadcast %14 : vector<1x32xf32> to vector<8x32xf32>
    %16 = arith.addf %13, %15 : vector<8x32xf32>
    %cst_16 = arith.constant 0.000000e+00 : f32
    %17 = vector.broadcast %cst_16 : f32 to vector<8x32xf32>
    %18 = arith.maximumf %16, %17 : vector<8x32xf32>
    %c0_17 = arith.constant 0 : index
    %c0_18 = arith.constant 0 : index
    %19 = vector.load %arg8[%c0_17, %c0_18] : memref<1x32xf32, #tpu.memory_space<vmem>>, vector<1x32xf32>
    %20 = vector.broadcast %19 : vector<1x32xf32> to vector<8x32xf32>
    %21 = arith.mulf %18, %20 : vector<8x32xf32>
    %cst_19 = arith.constant dense<0.000000e+00> : vector<8xf32>
    %22 = vector.multi_reduction <add>, %21, %cst_19 [1] : vector<8x32xf32> to vector<8xf32>
    %23 = vector.shape_cast %22 : vector<8xf32> to vector<8x1xf32>
    %c0_20 = arith.constant 0 : index
    %c0_21 = arith.constant 0 : index
    %24 = vector.load %arg9[%c0_20, %c0_21] : memref<1x1xf32, #tpu.memory_space<vmem>>, vector<1x1xf32>
    %25 = vector.broadcast %24 : vector<1x1xf32> to vector<8x1xf32>
    %26 = arith.addf %23, %25 : vector<8x1xf32>
    %c0_22 = arith.constant 0 : index
    %c0_23 = arith.constant 0 : index
    %27 = vector.load %arg10[%c0_22, %c0_23] : memref<8x1xf32, #tpu.memory_space<vmem>>, vector<8x1xf32>
    tpu.vector_store %arg10[%c0_22, %c0_23], %26 {strides = array<i32>} : memref<8x1xf32, #tpu.memory_space<vmem>>, vector<8x1xf32>,
    return
  }
  func.func @transform_0(%arg0: i32) -> (i32, i32) {
    %c0_i32 = arith.constant 0 : i32
    %c0_i32_0 = arith.constant 0 : i32
    return %arg0, %c0_i32 : i32, i32
  }
  func.func @transform_1(%arg0: i32) -> (i32, i32) {
    %c0_i32 = arith.constant 0 : i32
    %c0_i32_0 = arith.constant 0 : i32
    return %arg0, %c0_i32 : i32, i32
  }
  func.func @transform_2(%arg0: i32) -> (i32, i32) {
    %c0_i32 = arith.constant 0 : i32
    %c0_i32_0 = arith.constant 0 : i32
    %c0_i32_1 = arith.constant 0 : i32
    return %c0_i32, %c0_i32_0 : i32, i32
  }
  func.func @transform_3(%arg0: i32) -> (i32, i32) {
    %c0_i32 = arith.constant 0 : i32
    %c0_i32_0 = arith.constant 0 : i32
    %c0_i32_1 = arith.constant 0 : i32
    return %c0_i32, %c0_i32_0 : i32, i32
  }
  func.func @transform_4(%arg0: i32) -> (i32, i32) {
    %c0_i32 = arith.constant 0 : i32
    %c0_i32_0 = arith.constant 0 : i32
    %c0_i32_1 = arith.constant 0 : i32
    return %c0_i32, %c0_i32_0 : i32, i32
  }
  func.func @transform_5(%arg0: i32) -> (i32, i32) {
    %c0_i32 = arith.constant 0 : i32
    %c0_i32_0 = arith.constant 0 : i32
    %c0_i32_1 = arith.constant 0 : i32
    return %c0_i32, %c0_i32_0 : i32, i32
  }
  func.func @transform_6(%arg0: i32) -> (i32, i32) {
    %c0_i32 = arith.constant 0 : i32
    %c0_i32_0 = arith.constant 0 : i32
    %c0_i32_1 = arith.constant 0 : i32
    return %c0_i32, %c0_i32_0 : i32, i32
  }
  func.func @transform_7(%arg0: i32) -> (i32, i32) {
    %c0_i32 = arith.constant 0 : i32
    %c0_i32_0 = arith.constant 0 : i32
    %c0_i32_1 = arith.constant 0 : i32
    return %c0_i32, %c0_i32_0 : i32, i32
  }
  func.func @transform_8(%arg0: i32) -> (i32, i32) {
    %c0_i32 = arith.constant 0 : i32
    %c0_i32_0 = arith.constant 0 : i32
    %c0_i32_1 = arith.constant 0 : i32
    return %c0_i32, %c0_i32_0 : i32, i32
  }
  func.func @transform_9(%arg0: i32) -> (i32, i32) {
    %c0_i32 = arith.constant 0 : i32
    %c0_i32_0 = arith.constant 0 : i32
    return %arg0, %c0_i32 : i32, i32
  }
}

</mosaic_0001>

<llo_original>
// kernel: tpu_custom_call.1
$region0: #{tpu_custom_call.1}
  #allocation0 [shape = 'u32[]', space=smem, size = 0x4, offset = 0x4, fixed_abs, tag = 'smem constant byte address 0x4 - core index']
  #allocation1 [shape = 'u32[144,128]{1,0:T(1,128)}', space=vmem, size = 0x12000, scoped, tag = 'internal scratch']
  #allocation2 [shape = 'f32[1,1]{1,0:T(1,128)S(1)}', space=vmem, size = 0x200, scoped, tag = 'scoped memory for tpu_custom_call.1']
  %s0 = inlined_call_operand.hbm [shape: f32[8,16], index: 0, kind: input, shape index: {}]
  %s1 = inlined_call_operand.hbm [shape: f32[8,8], index: 1, kind: input, shape index: {}]
  %s2 = inlined_call_operand.hbm [shape: f32[16,32], index: 2, kind: input, shape index: {}]
  %s3 = inlined_call_operand.vmem [shape: f32[8,32], index: 3, kind: input, shape index: {}]
  %s4 = inlined_call_operand.vmem [shape: f32[1,32], index: 4, kind: input, shape index: {}]
  %s5 = inlined_call_operand.hbm [shape: f32[32,32], index: 5, kind: input, shape index: {}]
  %s6 = inlined_call_operand.vmem [shape: f32[1,32], index: 6, kind: input, shape index: {}]
  %s7 = inlined_call_operand.vmem [shape: f32[1,32], index: 7, kind: input, shape index: {}]
  %s8 = inlined_call_operand.<no memory space> [shape: f32[1,1], index: 8, kind: input, shape index: {}]
  %s9 = inlined_call_operand.vmem [shape: f32[8,1], index: 9, kind: output, shape index: {}]
  %s10 = sld [smem:[#allocation0]]
  $region62: #{tpu_custom_call.1} parent=0
    _
  %s12 = ssub.s32 1, %s10
  %s13 = scalar_select 0, %s12, %s10
  %v14 = vstv %s8
  %15 = vst [vmem:[#allocation2] sm:$0x1] %v14
  $region1: #{tpu_custom_call.1} parent=0
    #allocation3 [shape = 'u8[4096]{0}', space=vmem, size = 0x1000, scoped, tag = 'input window, operand 0, single buffered']
    #allocation4 [shape = 's32[1]{0}', space=sflag, size = 0x4, scoped, tag = 'scoped memory for tpu_custom_call.1']
    #allocation5 [shape = 'u8[4096]{0}', space=vmem, size = 0x1000, scoped, tag = 'input window, operand 1, single buffered']
    #allocation6 [shape = 's32[1]{0}', space=sflag, size = 0x4, scoped, tag = 'scoped memory for tpu_custom_call.1']
    #allocation7 [shape = 'u8[8192]{0}', space=vmem, size = 0x2000, scoped, tag = 'input window, operand 2, single buffered']
    #allocation8 [shape = 'u8[16384]{0}', space=vmem, size = 0x4000, scoped, tag = 'input window, operand 5, single buffered']
    #allocation9 [shape = 's32[1]{0}', space=sflag, size = 0x4, scoped, tag = 'scoped memory for tpu_custom_call.1']
    %16 = vsyncpa [#allocation4], 0
    %17 = vsyncpa [#allocation6], 0
    %18 = vsyncpa [#allocation9], 0
    // Predicated region
    $region2: #{tpu_custom_call.1} parent=1 // pred_check
      _
    $region3: #{tpu_custom_call.1} parent=1 // pred_check_branch
      %20 = sbr.rel (0) target = $region5
    $region4: #{tpu_custom_call.1} parent=1 // pred_region
      %s22 = ssub.s32 128, 128
      %23 = vsyncadd [#allocation4], %s22
      %s25 = sshll.u32 [#allocation3], 4
      %s26 = int_to_ptr.vmem [resolvable:$true] %s25
      %28 = dma.hbm_to_vmem [thread:$0]  %s0, 128, %s26, [#allocation4]
    $region5: #{tpu_custom_call.1} parent=1 // pred_fallthru
      _
    // Predicated region
    $region6: #{tpu_custom_call.1} parent=1 // pred_check
      _
    $region7: #{tpu_custom_call.1} parent=1 // pred_check_branch
      %30 = sbr.rel (0) target = $region9
    $region8: #{tpu_custom_call.1} parent=1 // pred_region
      %s32 = ssub.s32 128, 128
      %33 = vsyncadd [#allocation6], %s32
      %s35 = sshll.u32 [#allocation5], 4
      %s36 = int_to_ptr.vmem [resolvable:$true] %s35
      %38 = dma.hbm_to_vmem [thread:$0]  %s1, 128, %s36, [#allocation6]
    $region9: #{tpu_custom_call.1} parent=1 // pred_fallthru
      _
    // Predicated region
    $region10: #{tpu_custom_call.1} parent=1 // pred_check
      _
    $region11: #{tpu_custom_call.1} parent=1 // pred_check_branch
      %40 = sbr.rel (0) target = $region13
    $region12: #{tpu_custom_call.1} parent=1 // pred_region
      %s42 = ssub.s32 256, 256
      %43 = vsyncadd [#allocation6], %s42
      %s44 = sshll.u32 [#allocation7], 4
      %s45 = int_to_ptr.vmem [resolvable:$true] %s44
      %50 = dma.hbm_to_vmem [thread:$0]  %s2, 256, %s45, [#allocation6], 128, 128, 8
    $region13: #{tpu_custom_call.1} parent=1 // pred_fallthru
      _
    // Predicated region
    $region14: #{tpu_custom_call.1} parent=1 // pred_check
      _
    $region15: #{tpu_custom_call.1} parent=1 // pred_check_branch
      %52 = sbr.rel (0) target = $region17
    $region16: #{tpu_custom_call.1} parent=1 // pred_region
      _
    $region17: #{tpu_custom_call.1} parent=1 // pred_fallthru
      _
    // Predicated region
    $region18: #{tpu_custom_call.1} parent=1 // pred_check
      _
    $region19: #{tpu_custom_call.1} parent=1 // pred_check_branch
      %54 = sbr.rel (0) target = $region21
    $region20: #{tpu_custom_call.1} parent=1 // pred_region
      _
    $region21: #{tpu_custom_call.1} parent=1 // pred_fallthru
      _
    // Predicated region
    $region22: #{tpu_custom_call.1} parent=1 // pred_check
      _
    $region23: #{tpu_custom_call.1} parent=1 // pred_check_branch
      %56 = sbr.rel (0) target = $region25
    $region24: #{tpu_custom_call.1} parent=1 // pred_region
      %s58 = ssub.s32 512, 512
      %59 = vsyncadd [#allocation9], %s58
      %s60 = sshll.u32 [#allocation8], 4
      %s61 = int_to_ptr.vmem [resolvable:$true] %s60
      %66 = dma.hbm_to_vmem [thread:$0]  %s5, 512, %s61, [#allocation9], 128, 128, 8
    $region25: #{tpu_custom_call.1} parent=1 // pred_fallthru
      _
    // Predicated region
    $region26: #{tpu_custom_call.1} parent=1 // pred_check
      _
    $region27: #{tpu_custom_call.1} parent=1 // pred_check_branch
      %68 = sbr.rel (0) target = $region29
    $region28: #{tpu_custom_call.1} parent=1 // pred_region
      _
    $region29: #{tpu_custom_call.1} parent=1 // pred_fallthru
      _
    // Predicated region
    $region30: #{tpu_custom_call.1} parent=1 // pred_check
      _
    $region31: #{tpu_custom_call.1} parent=1 // pred_check_branch
      %70 = sbr.rel (0) target = $region33
    $region32: #{tpu_custom_call.1} parent=1 // pred_region
      _
    $region33: #{tpu_custom_call.1} parent=1 // pred_fallthru
      _
    // Predicated region
    $region34: #{tpu_custom_call.1} parent=1 // pred_check
      _
    $region35: #{tpu_custom_call.1} parent=1 // pred_check_branch
      %72 = sbr.rel (0) target = $region37
    $region36: #{tpu_custom_call.1} parent=1 // pred_region
      _
    $region37: #{tpu_custom_call.1} parent=1 // pred_fallthru
      _
    // Predicated region
    $region38: #{tpu_custom_call.1} parent=1 // pred_check
      _
    $region39: #{tpu_custom_call.1} parent=1 // pred_check_branch
      %74 = sbr.rel (0) target = $region41
    $region40: #{tpu_custom_call.1} parent=1 // pred_region
      %75 = dma.done [#allocation4], 128
    $region41: #{tpu_custom_call.1} parent=1 // pred_fallthru
      _
    // Predicated region
    $region42: #{tpu_custom_call.1} parent=1 // pred_check
      _
    $region43: #{tpu_custom_call.1} parent=1 // pred_check_branch
      %77 = sbr.rel (0) target = $region45
    $region44: #{tpu_custom_call.1} parent=1 // pred_region
      %78 = dma.done [#allocation6], 128
    $region45: #{tpu_custom_call.1} parent=1 // pred_fallthru
      _
    // Predicated region
    $region46: #{tpu_custom_call.1} parent=1 // pred_check
      _
    $region47: #{tpu_custom_call.1} parent=1 // pred_check_branch
      %80 = sbr.rel (0) target = $region49
    $region48: #{tpu_custom_call.1} parent=1 // pred_region
      %81 = dma.done [#allocation6], 256
    $region49: #{tpu_custom_call.1} parent=1 // pred_fallthru
      _
    // Predicated region
    $region50: #{tpu_custom_call.1} parent=1 // pred_check
      _
    $region51: #{tpu_custom_call.1} parent=1 // pred_check_branch
      %83 = sbr.rel (0) target = $region53
    $region52: #{tpu_custom_call.1} parent=1 // pred_region
      %84 = dma.done [#allocation9], 512
    $region53: #{tpu_custom_call.1} parent=1 // pred_fallthru
      _
    %v85 = vld [vmem:[#allocation3] sm:$0xff]
    %v86 = vld [vmem:[#allocation7] sm:$0xff]
    %v87 = vld [vmem:[#allocation7 + $0x8] sm:$0xff]
    %v88 = vld [vmem:[#allocation5] sm:$0xff]
    %v89 = vld [vmem:[%s3] sm:$0xff]
    %vm90 = vcmask 64512
    %v92 = vsel %vm90, %v88, 0
    %94 = vmatprep.subr.mxu0 0.0
    %95 = vmatpush1.msra.mxu0 %v89
    %96 = vmatprep.subr.mxu0 0.0
    %97 = vmatpush1.msra.mxu0 0.0
    %98 = vmatprep.subr.mxu0 0.0
    %99 = vmatpush1.msra.mxu0 0.0
    %100 = vmatprep.subr.mxu0 0.0
    %101 = vmatpush1.msra.mxu0 0.0
    %102 = vmatprep.subr.mxu0 0.0
    %103 = vmatpush1.msra.mxu0 0.0
    %104 = vmatprep.subr.mxu0 0.0
    %105 = vmatpush1.msra.mxu0 0.0
    %106 = vmatprep.subr.mxu0 0.0
    %107 = vmatpush1.msra.mxu0 0.0
    %108 = vmatprep.subr.mxu0 0.0
    %109 = vmatpush1.msra.mxu0 0.0
    %110 = vmatprep.subr.mxu0 0.0
    %111 = vmatpush1.msra.mxu0 0.0
    %112 = vmatprep.subr.mxu0 0.0
    %113 = vmatpush1.msra.mxu0 0.0
    %114 = vmatprep.subr.mxu0 0.0
    %115 = vmatpush1.msra.mxu0 0.0
    %116 = vmatprep.subr.mxu0 0.0
    %117 = vmatpush1.msra.mxu0 0.0
    %118 = vmatprep.subr.mxu0 0.0
    %119 = vmatpush1.msra.mxu0 0.0
    %120 = vmatprep.subr.mxu0 0.0
    %121 = vmatpush1.msra.mxu0 0.0
    %122 = vmatprep.subr.mxu0 0.0
    %123 = vmatpush1.msra.mxu0 0.0
    %124 = vmatprep.subr.mxu0 0.0
    %125 = vmatpush1.msra.mxu0 0.0
    %126 = vmatprep.subr.mxu0 0.0
    %127 = vmatpush1.msra.mxu0 0.0
    %128 = vmatprep.subr.mxu0 0.0
    %129 = vmatpush1.msra.mxu0 0.0
    %130 = vmatprep.subr.mxu0 0.0
    %131 = vmatpush1.msra.mxu0 0.0
    %132 = vmatprep.subr.mxu0 0.0
    %133 = vmatpush1.msra.mxu0 0.0
    %134 = vmatprep.subr.mxu0 0.0
    %135 = vmatpush1.msra.mxu0 0.0
    %136 = vmatprep.subr.mxu0 0.0
    %137 = vmatpush1.msra.mxu0 0.0
    %138 = vmatprep.subr.mxu0 0.0
    %139 = vmatpush1.msra.mxu0 0.0
    %140 = vmatprep.subr.mxu0 0.0
    %141 = vmatpush1.msra.mxu0 0.0
    %142 = vmatprep.subr.mxu0 0.0
    %143 = vmatpush1.msra.mxu0 0.0
    %144 = vmatprep.subr.mxu0 0.0
    %145 = vmatpush1.msra.mxu0 0.0
    %146 = vmatprep.subr.mxu0 0.0
    %147 = vmatpush1.msra.mxu0 0.0
    %148 = vmatprep.subr.mxu0 0.0
    %149 = vmatpush1.msra.mxu0 0.0
    %150 = vmatprep.subr.mxu0 0.0
    %151 = vmatpush1.msra.mxu0 0.0
    %152 = vmatprep.subr.mxu0 0.0
    %153 = vmatpush1.msra.mxu0 0.0
    %154 = vmatprep.subr.mxu0 0.0
    %155 = vmatpush1.msra.mxu0 0.0
    %156 = vmatprep.subr.mxu0 0.0
    %157 = vmatpush1.msra.mxu0 0.0
    %158 = vmatprep.mubr.f32.mxu0 0.0
    %159 = vmatmul.mubr.f32.gmra.mrb[0].mxu0 %v92
    %v160 = vpop.f32.mrb[0].mxu0
    %v161 = vadd.f32 0.0, %v160
    %v162 = vpop.f32.mrb[0].mxu0
    %163 = vdwg.mxu0
    %vm164 = vcmask 130048
    %v166 = vsel %vm164, %v85, 0
    %168 = vmatprep.subr.mxu0 0.0
    %169 = vmatpush1.msra.mxu0 %v86
    %170 = vmatprep.subr.mxu0 0.0
    %171 = vmatpush1.msra.mxu0 %v87
    %172 = vmatprep.subr.mxu0 0.0
    %173 = vmatpush1.msra.mxu0 0.0
    %174 = vmatprep.subr.mxu0 0.0
    %175 = vmatpush1.msra.mxu0 0.0
    %176 = vmatprep.subr.mxu0 0.0
    %177 = vmatpush1.msra.mxu0 0.0
    %178 = vmatprep.subr.mxu0 0.0
    %179 = vmatpush1.msra.mxu0 0.0
    %180 = vmatprep.subr.mxu0 0.0
    %181 = vmatpush1.msra.mxu0 0.0
    %182 = vmatprep.subr.mxu0 0.0
    %183 = vmatpush1.msra.mxu0 0.0
    %184 = vmatprep.subr.mxu0 0.0
    %185 = vmatpush1.msra.mxu0 0.0
    %186 = vmatprep.subr.mxu0 0.0
    %187 = vmatpush1.msra.mxu0 0.0
    %188 = vmatprep.subr.mxu0 0.0
    %189 = vmatpush1.msra.mxu0 0.0
    %190 = vmatprep.subr.mxu0 0.0
    %191 = vmatpush1.msra.mxu0 0.0
    %192 = vmatprep.subr.mxu0 0.0
    %193 = vmatpush1.msra.mxu0 0.0
    %194 = vmatprep.subr.mxu0 0.0
    %195 = vmatpush1.msra.mxu0 0.0
    %196 = vmatprep.subr.mxu0 0.0
    %197 = vmatpush1.msra.mxu0 0.0
    %198 = vmatprep.subr.mxu0 0.0
    %199 = vmatpush1.msra.mxu0 0.0
    %200 = vmatprep.subr.mxu0 0.0
    %201 = vmatpush1.msra.mxu0 0.0
    %202 = vmatprep.subr.mxu0 0.0
    %203 = vmatpush1.msra.mxu0 0.0
    %204 = vmatprep.subr.mxu0 0.0
    %205 = vmatpush1.msra.mxu0 0.0
    %206 = vmatprep.subr.mxu0 0.0
    %207 = vmatpush1.msra.mxu0 0.0
    %208 = vmatprep.subr.mxu0 0.0
    %209 = vmatpush1.msra.mxu0 0.0
    %210 = vmatprep.subr.mxu0 0.0
    %211 = vmatpush1.msra.mxu0 0.0
    %212 = vmatprep.subr.mxu0 0.0
    %213 = vmatpush1.msra.mxu0 0.0
    %214 = vmatprep.subr.mxu0 0.0
    %215 = vmatpush1.msra.mxu0 0.0
    %216 = vmatprep.subr.mxu0 0.0
    %217 = vmatpush1.msra.mxu0 0.0
    %218 = vmatprep.subr.mxu0 0.0
    %219 = vmatpush1.msra.mxu0 0.0
    %220 = vmatprep.subr.mxu0 0.0
    %221 = vmatpush1.msra.mxu0 0.0
    %222 = vmatprep.subr.mxu0 0.0
    %223 = vmatpush1.msra.mxu0 0.0
    %224 = vmatprep.subr.mxu0 0.0
    %225 = vmatpush1.msra.mxu0 0.0
    %226 = vmatprep.subr.mxu0 0.0
    %227 = vmatpush1.msra.mxu0 0.0
    %228 = vmatprep.subr.mxu0 0.0
    %229 = vmatpush1.msra.mxu0 0.0
    %230 = vmatprep.subr.mxu0 0.0
    %231 = vmatpush1.msra.mxu0 0.0
    %232 = vmatprep.mubr.f32.mxu0 0.0
    %233 = vmatmul.mubr.f32.gmra.mrb[0].mxu0 %v166
    %v234 = vpop.f32.mrb[0].mxu0
    %v235 = vadd.f32 %v161, %v234
    %v236 = vpop.f32.mrb[0].mxu0
    %237 = vdwg.mxu0
    %v238 = vld [vmem:[%s4] sm:$0x1]
    %v240 = vlaneseq
    %v241 = vshrl.u32 %v240, 7
    %v242 = vsub.s32 0, %v241
    %v243 = vrot.slane %v238, %v242
    %v245 = vadd.f32 %v235, %v243
    %v246 = vmax.f32 %v245, 0.0
    %v247 = vld [vmem:[#allocation8] sm:$0xff]
    %v248 = vld [vmem:[#allocation8 + $0x8] sm:$0xff]
    %v249 = vld [vmem:[#allocation8 + $0x10] sm:$0xff]
    %v250 = vld [vmem:[#allocation8 + $0x18] sm:$0xff]
    %v251 = vld [vmem:[%s6] sm:$0x1]
    %v253 = vlaneseq
    %v254 = vshrl.u32 %v253, 7
    %v255 = vsub.s32 0, %v254
    %v256 = vrot.slane %v251, %v255
    %vm258 = vcmask 261120
    %v260 = vsel %vm258, %v246, 0
    %262 = vmatprep.subr.mxu0 0.0
    %263 = vmatpush1.msra.mxu0 %v247
    %264 = vmatprep.subr.mxu0 0.0
    %265 = vmatpush1.msra.mxu0 %v248
    %266 = vmatprep.subr.mxu0 0.0
    %267 = vmatpush1.msra.mxu0 %v249
    %268 = vmatprep.subr.mxu0 0.0
    %269 = vmatpush1.msra.mxu0 %v250
    %270 = vmatprep.subr.mxu0 0.0
    %271 = vmatpush1.msra.mxu0 0.0
    %272 = vmatprep.subr.mxu0 0.0
    %273 = vmatpush1.msra.mxu0 0.0
    %274 = vmatprep.subr.mxu0 0.0
    %275 = vmatpush1.msra.mxu0 0.0
    %276 = vmatprep.subr.mxu0 0.0
    %277 = vmatpush1.msra.mxu0 0.0
    %278 = vmatprep.subr.mxu0 0.0
    %279 = vmatpush1.msra.mxu0 0.0
    %280 = vmatprep.subr.mxu0 0.0
    %281 = vmatpush1.msra.mxu0 0.0
    %282 = vmatprep.subr.mxu0 0.0
    %283 = vmatpush1.msra.mxu0 0.0
    %284 = vmatprep.subr.mxu0 0.0
    %285 = vmatpush1.msra.mxu0 0.0
    %286 = vmatprep.subr.mxu0 0.0
    %287 = vmatpush1.msra.mxu0 0.0
    %288 = vmatprep.subr.mxu0 0.0
    %289 = vmatpush1.msra.mxu0 0.0
    %290 = vmatprep.subr.mxu0 0.0
    %291 = vmatpush1.msra.mxu0 0.0
    %292 = vmatprep.subr.mxu0 0.0
    %293 = vmatpush1.msra.mxu0 0.0
    %294 = vmatprep.subr.mxu0 0.0
    %295 = vmatpush1.msra.mxu0 0.0
    %296 = vmatprep.subr.mxu0 0.0
    %297 = vmatpush1.msra.mxu0 0.0
    %298 = vmatprep.subr.mxu0 0.0
    %299 = vmatpush1.msra.mxu0 0.0
    %300 = vmatprep.subr.mxu0 0.0
    %301 = vmatpush1.msra.mxu0 0.0
    %302 = vmatprep.subr.mxu0 0.0
    %303 = vmatpush1.msra.mxu0 0.0
    %304 = vmatprep.subr.mxu0 0.0
    %305 = vmatpush1.msra.mxu0 0.0
    %306 = vmatprep.subr.mxu0 0.0
    %307 = vmatpush1.msra.mxu0 0.0
    %308 = vmatprep.subr.mxu0 0.0
    %309 = vmatpush1.msra.mxu0 0.0
    %310 = vmatprep.subr.mxu0 0.0
    %311 = vmatpush1.msra.mxu0 0.0
    %312 = vmatprep.subr.mxu0 0.0
    %313 = vmatpush1.msra.mxu0 0.0
    %314 = vmatprep.subr.mxu0 0.0
    %315 = vmatpush1.msra.mxu0 0.0
    %316 = vmatprep.subr.mxu0 0.0
    %317 = vmatpush1.msra.mxu0 0.0
    %318 = vmatprep.subr.mxu0 0.0
    %319 = vmatpush1.msra.mxu0 0.0
    %320 = vmatprep.subr.mxu0 0.0
    %321 = vmatpush1.msra.mxu0 0.0
    %322 = vmatprep.subr.mxu0 0.0
    %323 = vmatpush1.msra.mxu0 0.0
    %324 = vmatprep.subr.mxu0 0.0
    %325 = vmatpush1.msra.mxu0 0.0
    %326 = vmatprep.mubr.f32.mxu0 0.0
    %327 = vmatmul.mubr.f32.gmra.mrb[0].mxu0 %v260
    %v328 = vpop.f32.mrb[0].mxu0
    %v329 = vadd.f32 %v256, %v328
    %v330 = vpop.f32.mrb[0].mxu0
    %331 = vdwg.mxu0
    %v332 = vmax.f32 %v329, 0.0
    %v333 = vld [vmem:[%s7] sm:$0x1]
    %v335 = vlaneseq
    %v336 = vshrl.u32 %v335, 7
    %v337 = vsub.s32 0, %v336
    %v338 = vrot.slane %v333, %v337
    %v340 = vmul.f32 %v332, %v338
    %v341 = vsel %vm258, %v340, 0.0
    %342 = vadd.xlane.f32.xlu0 %v341
    %v343 = vpop.xlane.xlu0 %342
    %v344 = vld [vmem:[#allocation2] sm:$0x1]
    %v346 = vlaneseq
    %v347 = vshrl.u32 %v346, 7
    %v348 = vsub.s32 0, %v347
    %v349 = vrot.slane %v344, %v348
    %v351 = vadd.f32 %v343, %v349
    %vm352 = vcmask 7168
    %353 = vst.msk [vmem:[%s9] sm:$0xff] %vm352, %v351
    // Predicated region
    $region54: #{tpu_custom_call.1} parent=1 // pred_check
      _
    $region55: #{tpu_custom_call.1} parent=1 // pred_check_branch
      %355 = sbr.rel (0) target = $region57
    $region56: #{tpu_custom_call.1} parent=1 // pred_region
      _
    $region57: #{tpu_custom_call.1} parent=1 // pred_fallthru
      _
    // Predicated region
    $region58: #{tpu_custom_call.1} parent=1 // pred_check
      _
    $region59: #{tpu_custom_call.1} parent=1 // pred_check_branch
      %357 = sbr.rel (0) target = $region61
    $region60: #{tpu_custom_call.1} parent=1 // pred_region
      _
    $region61: #{tpu_custom_call.1} parent=1 // pred_fallthru
      _
    %358 = vsyncpa [#allocation4], 1
    %359 = vsyncpa [#allocation6], 1
    %360 = vsyncpa [#allocation9], 1

</llo_original>
